<compile_context>
chip_gen: v6e
topology: v6e:2x2x1
jax: 0.10.0
libtpu: 0.0.40
codegen_flags: <defaults>
</compile_context>

<pallas_src>
import jax
import jax.numpy as jnp
from jax.experimental import pallas as pl
from jax.experimental.pallas import tpu as pltpu


def _round_up(n, m):
    return ((n + m - 1) // m) * m


def _make_fnn_kernel(num_layers):
    """Kernel refs: (xT, w1, b1, ..., wN, bN, out).

    Feature-major: xT tile is (in_pad, tb); weights are (out_pad, in_pad) in the
    compute dtype (PyTorch nn.Linear layout); biases are (out_pad, 1) f32.
    ReLU after every layer except the last, matching
    nn.Sequential([Linear, ReLU, ..., Linear, ReLU, Linear]).
    The last layer's single real output row is stored lane-dense as (1, tb) f32.
    """

    def kernel(*refs):
        x_ref = refs[0]
        o_ref = refs[-1]
        param_refs = refs[1:-1]  # alternating (w, b)

        h = x_ref[...]                        # (in_pad, tb) compute dtype
        compute_dtype = h.dtype
        acc = None
        for i in range(num_layers):
            w = param_refs[2 * i][...]        # (out_pad, in_pad) compute dtype
            b = param_refs[2 * i + 1][...]    # (out_pad, 1) f32, lane-broadcast
            acc = jnp.dot(w, h, preferred_element_type=jnp.float32) + b
            if i < num_layers - 1:
                acc = jnp.maximum(acc, 0.0)   # f32 elementwise (v5e-safe)
                h = acc.astype(compute_dtype)
        o_ref[...] = acc[0:1, :].astype(o_ref.dtype)   # lane-dense (1, tb) store

    return kernel


def prepare_fnn_params(params, compute_dtype=jnp.bfloat16):
    """Pad / cast parameters ONCE (hoisted out of the per-call hot path).

    params: list of (W, b) with W: (out, in), b: (out,)  — nn.Linear layout.
    Feature dims are zero-padded to multiples of 128 (weight lane axis /
    activation sublane axis); the final scalar output dim is padded to 16.
    Returns a flat list [w1p, b1p, w2p, b2p, ...].
    """
    num_layers = len(params)
    prepared = []
    for li, (w, b) in enumerate(params):
        out_d, in_d = w.shape
        in_pad = _round_up(in_d, 128)
        out_pad = _round_up(out_d, 128) if li < num_layers - 1 else _round_up(out_d, 16)
        wp = jnp.zeros((out_pad, in_pad), compute_dtype)
        wp = wp.at[:out_d, :in_d].set(w.astype(compute_dtype))
        bp = jnp.zeros((out_pad, 1), jnp.float32)
        bp = bp.at[:out_d, 0].set(b.astype(jnp.float32))
        prepared.append(wp)
        prepared.append(bp)
    return prepared


def fnn_forward(x, prepared_params, *, block_batch=1024):
    """Run the fused MLP Pallas kernel.

    x:               (batch, input_size) float
    prepared_params: output of prepare_fnn_params()
    Returns (batch, 1) float32.
    """
    num_layers = len(prepared_params) // 2
    weights = prepared_params[0::2]
    compute_dtype = weights[0].dtype
    cd_itemsize = jnp.dtype(compute_dtype).itemsize

    batch, in_dim = x.shape
    in_pad = weights[0].shape[1]
    assert in_dim <= in_pad
    max_pad = max(max(int(d) for d in w.shape) for w in weights)

    param_bytes = sum(int(p.size) * p.dtype.itemsize for p in prepared_params)

    # --- per-generation VMEM cap (~7/8 physical: ~112 MiB v5e/v6e, ~56 MiB v7x) ---
    try:
        vmem_cap = int(pltpu.get_tpu_info().vmem_capacity_bytes) * 7 // 8
    except Exception:
        vmem_cap = 56 << 20  # v7x-safe fallback

    # --- batch tile: lane axis -> multiple of 128; >=2 tiles when batch allows ---
    batch_pad_min = _round_up(batch, 128)
    tb = max(128, _round_up(min(block_batch, batch_pad_min), 128))
    if batch_pad_min >= 256:  # keep >=2 grid steps so v7x megacore can split work
        tb = min(tb, _round_up(batch_pad_min // 2, 128))

    def vmem_needed(t):
        io_tiles = in_pad * t * cd_itemsize + t * 4           # x tile + out row
        act = t * max_pad * (4 + cd_itemsize)                 # f32 acc + cd h
        return param_bytes + 2 * io_tiles + 2 * act + (4 << 20)

    while tb > 128 and vmem_needed(tb) > vmem_cap:
        tb = max(128, _round_up(tb // 2, 128))

    batch_pad = _round_up(batch, tb)
    n_tiles = batch_pad // tb

    # TODO(synk): if 1x padded params + activations ever exceed vmem_cap (deep or
    # very wide nets, mostly under v7x's 64 MiB), add a K/N weight-tiling grid axis
    # with a pl.when-initialized f32 accumulator instead of whole-network residency.
    vmem_limit = int(min(max(vmem_needed(tb), 32 << 20), vmem_cap))

    # --- input: single fused cast + transpose + pad (feature-major) ---
    xT = jnp.pad(
        x.astype(compute_dtype).T,
        ((0, in_pad - in_dim), (0, batch_pad - batch)),
    )

    kernel = _make_fnn_kernel(num_layers)

    # x / out tiled along the batch (lane) axis; params VMEM-resident with a
    # constant block index and single-buffered (no wasted second copy).
    in_specs = [pl.BlockSpec((in_pad, tb), lambda i: (0, i))]
    for p in prepared_params:
        in_specs.append(
            pl.BlockSpec(p.shape, lambda i: (0, 0), pipeline_mode=pl.Buffered(1))
        )
    out_specs = pl.BlockSpec((1, tb), lambda i: (0, i))

    flops = 2 * batch_pad * sum(int(w.shape[0]) * int(w.shape[1]) for w in weights)
    bytes_accessed = param_bytes + batch_pad * in_pad * cd_itemsize + batch_pad * 4

    out_row = pl.pallas_call(
        kernel,
        out_shape=jax.ShapeDtypeStruct((1, batch_pad), jnp.float32),
        grid=(n_tiles,),
        in_specs=in_specs,
        out_specs=out_specs,
        compiler_params=pltpu.CompilerParams(
            dimension_semantics=("parallel",),
            vmem_limit_bytes=vmem_limit,
        ),
        cost_estimate=pl.CostEstimate(
            flops=flops, transcendentals=0, bytes_accessed=bytes_accessed
        ),
    )(xT, *prepared_params)

    # Tiny epilogue: drop padded batch columns, reshape to (batch, 1).
    return out_row[0, :batch].reshape(batch, 1)


def init_fnn_params(key, input_size, hidden_sizes):
    """Param init mirroring FNN.__init__ layer shapes (nn.Linear layout).

    Layers: Linear(input_size, h0), ..., Linear(h[-1], 1).
    W: (out, in), b: (out,), Uniform(-1/sqrt(fan_in), 1/sqrt(fan_in)) like PyTorch.
    """
    dims = [input_size] + list(hidden_sizes) + [1]
    params = []
    for i in range(len(dims) - 1):
        fan_in, fan_out = dims[i], dims[i + 1]
        key, kw, kb = jax.random.split(key, 3)
        bound = 1.0 / jnp.sqrt(jnp.float32(fan_in))
        w = jax.random.uniform(
            kw, (fan_out, fan_in), jnp.float32, minval=-bound, maxval=bound
        )
        b = jax.random.uniform(
            kb, (fan_out,), jnp.float32, minval=-bound, maxval=bound
        )
        params.append((w, b))
    return params


def fnn_reference(x, params, compute_dtype=jnp.bfloat16):
    """Pure-JAX reference with matching precision handling (bf16 matmul, f32 acc)."""
    n = len(params)
    h = x.astype(compute_dtype)
    acc = None
    for i, (w, b) in enumerate(params):
        acc = jnp.dot(
            h, w.astype(compute_dtype).T, preferred_element_type=jnp.float32
        ) + b.astype(jnp.float32)[None, :]
        if i < n - 1:
            acc = jnp.maximum(acc, 0.0)
            h = acc.astype(compute_dtype)
    return acc


if __name__ == "__main__":
    key = jax.random.PRNGKey(0)
    key, kx = jax.random.split(key)

    batch = 256
    input_size = 16
    hidden_sizes = (32, 32)

    x = jax.random.normal(kx, (batch, input_size), dtype=jnp.float32)
    params = init_fnn_params(key, input_size, hidden_sizes)

    prepared = prepare_fnn_params(params)              # pad/cast once, off the hot path
    out = fnn_forward(x, prepared, block_batch=1024)   # -> grid=(2,) tiles of 128 lanes
    out = jax.block_until_ready(out)

    ref = fnn_reference(x, params)
    assert out.shape == (batch, 1), out.shape
    assert jnp.allclose(out, ref, atol=1e-2, rtol=1e-2), "mismatch vs reference"

    print("KERNEL_OK")
</pallas_src>

<mosaic_0001>
module attributes {stable_mosaic.version = 11 : i64} {
  func.func @kernel(%arg0: i32, %arg1: memref<128x128xbf16, #tpu.memory_space<vmem>>, %arg2: memref<128x128xbf16, #tpu.memory_space<vmem>>, %arg3: memref<128x1xf32, #tpu.memory_space<vmem>>, %arg4: memref<128x128xbf16, #tpu.memory_space<vmem>>, %arg5: memref<128x1xf32, #tpu.memory_space<vmem>>, %arg6: memref<16x128xbf16, #tpu.memory_space<vmem>>, %arg7: memref<16x1xf32, #tpu.memory_space<vmem>>, %arg8: memref<1x128xf32, #tpu.memory_space<vmem>>) attributes {dimension_semantics = [#tpu.dimension_semantics<parallel>], iteration_bounds = array<i64: 2>, scalar_prefetch = 0 : i64, scratch_operands = 0 : i64, tpu.core_type = #tpu.core_type<tc>, window_params = [{transform_indices = @transform_0, window_bounds = array<i64: 128, 128>}, {pipeline_mode = #tpu.pipeline_mode<synchronous>, transform_indices = @transform_1, window_bounds = array<i64: 128, 128>}, {pipeline_mode = #tpu.pipeline_mode<synchronous>, transform_indices = @transform_2, window_bounds = array<i64: 128, 1>}, {pipeline_mode = #tpu.pipeline_mode<synchronous>, transform_indices = @transform_3, window_bounds = array<i64: 128, 128>}, {pipeline_mode = #tpu.pipeline_mode<synchronous>, transform_indices = @transform_4, window_bounds = array<i64: 128, 1>}, {pipeline_mode = #tpu.pipeline_mode<synchronous>, transform_indices = @transform_5, window_bounds = array<i64: 16, 128>}, {pipeline_mode = #tpu.pipeline_mode<synchronous>, transform_indices = @transform_6, window_bounds = array<i64: 16, 1>}, {transform_indices = @transform_7, window_bounds = array<i64: 1, 128>}]} {
    %c0 = arith.constant 0 : index
    %c0_0 = arith.constant 0 : index
    %0 = vector.load %arg1[%c0, %c0_0] : memref<128x128xbf16, #tpu.memory_space<vmem>>, vector<128x128xbf16>
    %c0_1 = arith.constant 0 : index
    %c0_2 = arith.constant 0 : index
    %1 = vector.load %arg2[%c0_1, %c0_2] : memref<128x128xbf16, #tpu.memory_space<vmem>>, vector<128x128xbf16>
    %c0_3 = arith.constant 0 : index
    %c0_4 = arith.constant 0 : index
    %2 = vector.load %arg3[%c0_3, %c0_4] : memref<128x1xf32, #tpu.memory_space<vmem>>, vector<128x1xf32>
    %cst = arith.constant dense<0.000000e+00> : vector<128x128xf32>
    %3 = tpu.matmul %1, %0, %cst {dimension_numbers = #tpu.dot_dimension_numbers<[1], [0], [0], [1], [0, 0, 1, 1], [], []>} : vector<128x128xbf16>, vector<128x128xbf16>, vector<128x128xf32> -> vector<128x128xf32>
    %4 = vector.broadcast %2 : vector<128x1xf32> to vector<128x128xf32>
    %5 = arith.addf %3, %4 : vector<128x128xf32>
    %cst_5 = arith.constant 0.000000e+00 : f32
    %6 = vector.broadcast %cst_5 : f32 to vector<128x128xf32>
    %7 = arith.maximumf %5, %6 : vector<128x128xf32>
    %8 = arith.truncf %7 : vector<128x128xf32> to vector<128x128xbf16>
    %c0_6 = arith.constant 0 : index
    %c0_7 = arith.constant 0 : index
    %9 = vector.load %arg4[%c0_6, %c0_7] : memref<128x128xbf16, #tpu.memory_space<vmem>>, vector<128x128xbf16>
    %c0_8 = arith.constant 0 : index
    %c0_9 = arith.constant 0 : index
    %10 = vector.load %arg5[%c0_8, %c0_9] : memref<128x1xf32, #tpu.memory_space<vmem>>, vector<128x1xf32>
    %cst_10 = arith.constant dense<0.000000e+00> : vector<128x128xf32>
    %11 = tpu.matmul %9, %8, %cst_10 {dimension_numbers = #tpu.dot_dimension_numbers<[1], [0], [0], [1], [0, 0, 1, 1], [], []>} : vector<128x128xbf16>, vector<128x128xbf16>, vector<128x128xf32> -> vector<128x128xf32>
    %12 = vector.broadcast %10 : vector<128x1xf32> to vector<128x128xf32>
    %13 = arith.addf %11, %12 : vector<128x128xf32>
    %cst_11 = arith.constant 0.000000e+00 : f32
    %14 = vector.broadcast %cst_11 : f32 to vector<128x128xf32>
    %15 = arith.maximumf %13, %14 : vector<128x128xf32>
    %16 = arith.truncf %15 : vector<128x128xf32> to vector<128x128xbf16>
    %c0_12 = arith.constant 0 : index
    %c0_13 = arith.constant 0 : index
    %17 = vector.load %arg6[%c0_12, %c0_13] : memref<16x128xbf16, #tpu.memory_space<vmem>>, vector<16x128xbf16>
    %c0_14 = arith.constant 0 : index
    %c0_15 = arith.constant 0 : index
    %18 = vector.load %arg7[%c0_14, %c0_15] : memref<16x1xf32, #tpu.memory_space<vmem>>, vector<16x1xf32>
    %cst_16 = arith.constant dense<0.000000e+00> : vector<16x128xf32>
    %19 = tpu.matmul %17, %16, %cst_16 {dimension_numbers = #tpu.dot_dimension_numbers<[1], [0], [0], [1], [0, 0, 1, 1], [], []>} : vector<16x128xbf16>, vector<128x128xbf16>, vector<16x128xf32> -> vector<16x128xf32>
    %20 = vector.broadcast %18 : vector<16x1xf32> to vector<16x128xf32>
    %21 = arith.addf %19, %20 : vector<16x128xf32>
    %22 = vector.extract_strided_slice %21 {offsets = [0, 0], sizes = [1, 128], strides = [1, 1]} : vector<16x128xf32> to vector<1x128xf32>
    %c0_17 = arith.constant 0 : index
    %c0_18 = arith.constant 0 : index
    %23 = vector.load %arg8[%c0_17, %c0_18] : memref<1x128xf32, #tpu.memory_space<vmem>>, vector<1x128xf32>
    tpu.vector_store %arg8[%c0_17, %c0_18], %22 {strides = array<i32>} : memref<1x128xf32, #tpu.memory_space<vmem>>, vector<1x128xf32>,
    return
  }
  func.func @transform_0(%arg0: i32) -> (i32, i32) {
    %c0_i32 = arith.constant 0 : i32
    %c0_i32_0 = arith.constant 0 : i32
    return %c0_i32, %arg0 : i32, i32
  }
  func.func @transform_1(%arg0: i32) -> (i32, i32) {
    %c0_i32 = arith.constant 0 : i32
    %c0_i32_0 = arith.constant 0 : i32
    %c0_i32_1 = arith.constant 0 : i32
    return %c0_i32, %c0_i32_0 : i32, i32
  }
  func.func @transform_2(%arg0: i32) -> (i32, i32) {
    %c0_i32 = arith.constant 0 : i32
    %c0_i32_0 = arith.constant 0 : i32
    %c0_i32_1 = arith.constant 0 : i32
    return %c0_i32, %c0_i32_0 : i32, i32
  }
  func.func @transform_3(%arg0: i32) -> (i32, i32) {
    %c0_i32 = arith.constant 0 : i32
    %c0_i32_0 = arith.constant 0 : i32
    %c0_i32_1 = arith.constant 0 : i32
    return %c0_i32, %c0_i32_0 : i32, i32
  }
  func.func @transform_4(%arg0: i32) -> (i32, i32) {
    %c0_i32 = arith.constant 0 : i32
    %c0_i32_0 = arith.constant 0 : i32
    %c0_i32_1 = arith.constant 0 : i32
    return %c0_i32, %c0_i32_0 : i32, i32
  }
  func.func @transform_5(%arg0: i32) -> (i32, i32) {
    %c0_i32 = arith.constant 0 : i32
    %c0_i32_0 = arith.constant 0 : i32
    %c0_i32_1 = arith.constant 0 : i32
    return %c0_i32, %c0_i32_0 : i32, i32
  }
  func.func @transform_6(%arg0: i32) -> (i32, i32) {
    %c0_i32 = arith.constant 0 : i32
    %c0_i32_0 = arith.constant 0 : i32
    %c0_i32_1 = arith.constant 0 : i32
    return %c0_i32, %c0_i32_0 : i32, i32
  }
  func.func @transform_7(%arg0: i32) -> (i32, i32) {
    %c0_i32 = arith.constant 0 : i32
    %c0_i32_0 = arith.constant 0 : i32
    return %c0_i32, %arg0 : i32, i32
  }
}

</mosaic_0001>

<llo_original>
// kernel: tpu_custom_call.1
$region0: #{tpu_custom_call.1}
  #allocation0 [shape = 'u32[]', space=smem, size = 0x4, offset = 0x4, fixed_abs, tag = 'smem constant byte address 0x4 - core index']
  #allocation1 [shape = 'u32[144,128]{1,0:T(1,128)}', space=vmem, size = 0x12000, scoped, tag = 'internal scratch']
  %s0 = inlined_call_operand.vmem [shape: bf16[128,256], index: 0, kind: input, shape index: {}]
  %s1 = inlined_call_operand.vmem [shape: bf16[128,128], index: 1, kind: input, shape index: {}]
  %s2 = inlined_call_operand.vmem [shape: f32[128,1], index: 2, kind: input, shape index: {}]
  %s3 = inlined_call_operand.vmem [shape: bf16[128,128], index: 3, kind: input, shape index: {}]
  %s4 = inlined_call_operand.vmem [shape: f32[128,1], index: 4, kind: input, shape index: {}]
  %s5 = inlined_call_operand.vmem [shape: bf16[16,128], index: 5, kind: input, shape index: {}]
  %s6 = inlined_call_operand.vmem [shape: f32[16,1], index: 6, kind: input, shape index: {}]
  %s7 = inlined_call_operand.hbm [shape: f32[1,256], index: 7, kind: output, shape index: {}]
  %s8 = sld [smem:[#allocation0]]
  $region102: #{tpu_custom_call.1} parent=0
    _
  %s10 = ssub.s32 1, %s8
  %s11 = scalar_select 0, %s10, %s8
  $region1: #{tpu_custom_call.1} parent=0
    #allocation2 [shape = 'u8[65536]{0}', space=vmem, size = 0x10000, scoped, tag = 'input window, operand 0']
    #allocation3 [shape = 'u8[1024]{0}', space=vmem, size = 0x400, scoped, tag = 'output window, operand 0']
    #allocation4 [shape = 's32[2]{0}', space=sflag, size = 0x8, scoped, tag = 'scoped memory for tpu_custom_call.1']
    %12 = vsyncpa [#allocation4], 0
    %s13 = scalar_lea.sflag [#allocation4], 1
    %14 = vsyncpa %s13, 0
    loop: start=0, step=1, limit=4
    $region2: #{tpu_custom_call.1} parent=1 // loop_pre_header
      _
    $region3: #{tpu_custom_call.1} parent=1 // loop_header
      %s16 = sphi 0, %s20
      %p17 = scmp.ge.s32.totalorder %s16, 4
      %s26 = sphi 0, %s28
      %s29 = sphi 0, %s26
      %s30 = sphi 0, %s29
      %s46 = sphi 0, %s30
      %s50 = sphi 0, %s50
      %s52 = sphi 0, %s50
      %s53 = sphi 0, %s52
      %s67 = sphi 0, %s53
      %s71 = sphi 0, %s71
      %s73 = sphi 0, %s71
      %s74 = sphi 0, %s73
      %s88 = sphi 0, %s74
      %s92 = sphi 0, %s92
      %s94 = sphi 0, %s92
      %s95 = sphi 0, %s94
      %s109 = sphi 0, %s95
      %s113 = sphi 0, %s113
      %s115 = sphi 0, %s113
      %s116 = sphi 0, %s115
      %s130 = sphi 0, %s116
      %s134 = sphi 0, %s134
      %s136 = sphi 0, %s134
      %s137 = sphi 0, %s136
      %s151 = sphi 0, %s137
      %s155 = sphi 0, %s155
      %s157 = sphi 0, %s155
      %s158 = sphi 0, %s157
      %s172 = sphi 0, %s158
      %s178 = sphi 0, %s180
      %s181 = sphi 0, %s178
      %s182 = sphi 0, %s181
      %s198 = sphi 0, %s182
    $region4: #{tpu_custom_call.1} parent=1 // loop_header_branch
      %19 = sbr.rel (%p17) target = $region8
    $region5: #{tpu_custom_call.1} parent=1 // loop_body
      %s21 = ssub.s32 %s16, 1
      %s22 = ssub.s32 %s16, 2
      %s23 = sadd.s32 %s16, 1
      %s24 = ssub.s32 %s16, %s23
      %p25 = scmp.eq.s32.totalorder %s24, 0
      %s27 = sadd.s32 %s26, 1
      %s28 = scalar_select %p25, %s26, %s27
      %p31 = pneg %p25
      %p32 = scmp.eq.s32.totalorder %s16, 1
      %p33 = por %p31, %p32
      %p34 = scmp.ne.s32.totalorder %s26, %s29
      %p35 = scmp.eq.s32.totalorder %s16, 0
      %p36 = por %p34, %p35
      %p37 = scmp.ne.s32.totalorder %s26, %s29
      %p38 = scmp.eq.s32.totalorder %s21, 1
      %p39 = por %p37, %p38
      %p40 = scmp.ne.s32.totalorder %s29, %s30
      %p41 = scmp.eq.s32.totalorder %s21, 0
      %p42 = por %p40, %p41
      %p43 = scmp.ne.s32.totalorder %s29, %s30
      %p44 = scmp.eq.s32.totalorder %s22, 1
      %p45 = por %p43, %p44
      %p47 = scmp.ne.s32.totalorder %s30, %s46
      %p48 = scmp.eq.s32.totalorder %s22, 0
      %p49 = por %p47, %p48
      %s51 = sadd.s32 %s50, 1
      %p54 = scmp.eq.s32.totalorder %s16, 1
      %p55 = scmp.ne.s32.totalorder %s50, %s52
      %p56 = scmp.eq.s32.totalorder %s16, 0
      %p57 = por %p55, %p56
      %p58 = scmp.ne.s32.totalorder %s50, %s52
      %p59 = scmp.eq.s32.totalorder %s21, 1
      %p60 = por %p58, %p59
      %p61 = scmp.ne.s32.totalorder %s52, %s53
      %p62 = scmp.eq.s32.totalorder %s21, 0
      %p63 = por %p61, %p62
      %p64 = scmp.ne.s32.totalorder %s52, %s53
      %p65 = scmp.eq.s32.totalorder %s22, 1
      %p66 = por %p64, %p65
      %p68 = scmp.ne.s32.totalorder %s53, %s67
      %p69 = scmp.eq.s32.totalorder %s22, 0
      %p70 = por %p68, %p69
      %s72 = sadd.s32 %s71, 1
      %p75 = scmp.eq.s32.totalorder %s16, 1
      %p76 = scmp.ne.s32.totalorder %s71, %s73
      %p77 = scmp.eq.s32.totalorder %s16, 0
      %p78 = por %p76, %p77
      %p79 = scmp.ne.s32.totalorder %s71, %s73
      %p80 = scmp.eq.s32.totalorder %s21, 1
      %p81 = por %p79, %p80
      %p82 = scmp.ne.s32.totalorder %s73, %s74
      %p83 = scmp.eq.s32.totalorder %s21, 0
      %p84 = por %p82, %p83
      %p85 = scmp.ne.s32.totalorder %s73, %s74
      %p86 = scmp.eq.s32.totalorder %s22, 1
      %p87 = por %p85, %p86
      %p89 = scmp.ne.s32.totalorder %s74, %s88
      %p90 = scmp.eq.s32.totalorder %s22, 0
      %p91 = por %p89, %p90
      %s93 = sadd.s32 %s92, 1
      %p96 = scmp.eq.s32.totalorder %s16, 1
      %p97 = scmp.ne.s32.totalorder %s92, %s94
      %p98 = scmp.eq.s32.totalorder %s16, 0
      %p99 = por %p97, %p98
      %p100 = scmp.ne.s32.totalorder %s92, %s94
      %p101 = scmp.eq.s32.totalorder %s21, 1
      %p102 = por %p100, %p101
      %p103 = scmp.ne.s32.totalorder %s94, %s95
      %p104 = scmp.eq.s32.totalorder %s21, 0
      %p105 = por %p103, %p104
      %p106 = scmp.ne.s32.totalorder %s94, %s95
      %p107 = scmp.eq.s32.totalorder %s22, 1
      %p108 = por %p106, %p107
      %p110 = scmp.ne.s32.totalorder %s95, %s109
      %p111 = scmp.eq.s32.totalorder %s22, 0
      %p112 = por %p110, %p111
      %s114 = sadd.s32 %s113, 1
      %p117 = scmp.eq.s32.totalorder %s16, 1
      %p118 = scmp.ne.s32.totalorder %s113, %s115
      %p119 = scmp.eq.s32.totalorder %s16, 0
      %p120 = por %p118, %p119
      %p121 = scmp.ne.s32.totalorder %s113, %s115
      %p122 = scmp.eq.s32.totalorder %s21, 1
      %p123 = por %p121, %p122
      %p124 = scmp.ne.s32.totalorder %s115, %s116
      %p125 = scmp.eq.s32.totalorder %s21, 0
      %p126 = por %p124, %p125
      %p127 = scmp.ne.s32.totalorder %s115, %s116
      %p128 = scmp.eq.s32.totalorder %s22, 1
      %p129 = por %p127, %p128
      %p131 = scmp.ne.s32.totalorder %s116, %s130
      %p132 = scmp.eq.s32.totalorder %s22, 0
      %p133 = por %p131, %p132
      %s135 = sadd.s32 %s134, 1
      %p138 = scmp.eq.s32.totalorder %s16, 1
      %p139 = scmp.ne.s32.totalorder %s134, %s136
      %p140 = scmp.eq.s32.totalorder %s16, 0
      %p141 = por %p139, %p140
      %p142 = scmp.ne.s32.totalorder %s134, %s136
      %p143 = scmp.eq.s32.totalorder %s21, 1
      %p144 = por %p142, %p143
      %p145 = scmp.ne.s32.totalorder %s136, %s137
      %p146 = scmp.eq.s32.totalorder %s21, 0
      %p147 = por %p145, %p146
      %p148 = scmp.ne.s32.totalorder %s136, %s137
      %p149 = scmp.eq.s32.totalorder %s22, 1
      %p150 = por %p148, %p149
      %p152 = scmp.ne.s32.totalorder %s137, %s151
      %p153 = scmp.eq.s32.totalorder %s22, 0
      %p154 = por %p152, %p153
      %s156 = sadd.s32 %s155, 1
      %p159 = scmp.eq.s32.totalorder %s16, 1
      %p160 = scmp.ne.s32.totalorder %s155, %s157
      %p161 = scmp.eq.s32.totalorder %s16, 0
      %p162 = por %p160, %p161
      %p163 = scmp.ne.s32.totalorder %s155, %s157
      %p164 = scmp.eq.s32.totalorder %s21, 1
      %p165 = por %p163, %p164
      %p166 = scmp.ne.s32.totalorder %s157, %s158
      %p167 = scmp.eq.s32.totalorder %s21, 0
      %p168 = por %p166, %p167
      %p169 = scmp.ne.s32.totalorder %s157, %s158
      %p170 = scmp.eq.s32.totalorder %s22, 1
      %p171 = por %p169, %p170
      %p173 = scmp.ne.s32.totalorder %s158, %s172
      %p174 = scmp.eq.s32.totalorder %s22, 0
      %p175 = por %p173, %p174
      %s176 = ssub.s32 %s16, %s23
      %p177 = scmp.eq.s32.totalorder %s176, 0
      %s179 = sadd.s32 %s178, 1
      %s180 = scalar_select %p177, %s178, %s179
      %p183 = pneg %p177
      %p184 = scmp.eq.s32.totalorder %s16, 1
      %p185 = por %p183, %p184
      %p186 = scmp.ne.s32.totalorder %s178, %s181
      %p187 = scmp.eq.s32.totalorder %s16, 0
      %p188 = por %p186, %p187
      %p189 = scmp.ne.s32.totalorder %s178, %s181
      %p190 = scmp.eq.s32.totalorder %s21, 1
      %p191 = por %p189, %p190
      %p192 = scmp.ne.s32.totalorder %s181, %s182
      %p193 = scmp.eq.s32.totalorder %s21, 0
      %p194 = por %p192, %p193
      %p195 = scmp.ne.s32.totalorder %s181, %s182
      %p196 = scmp.eq.s32.totalorder %s22, 1
      %p197 = por %p195, %p196
      %p199 = scmp.ne.s32.totalorder %s182, %s198
      %p200 = scmp.eq.s32.totalorder %s22, 0
      %p201 = por %p199, %p200
      %p202 = scmp.le.s32.totalorder 1, %s16
      %p203 = scmp.lt.s32.totalorder %s16, 3
      %p204 = pnand %p202, %p203
      %p205 = pneg %p204
      // Predicated region
      $region9: #{tpu_custom_call.1} parent=5 // pred_check
        _
      $region10: #{tpu_custom_call.1} parent=5 // pred_check_branch
        %207 = sbr.rel (%p204) target = $region12
      $region11: #{tpu_custom_call.1} parent=5 // pred_region
        %s208 = ssub.s32 %s16, 1
        // Predicated region
        $region13: #{tpu_custom_call.1} parent=11 // pred_check
          %p209 = pneg %p63
        $region14: #{tpu_custom_call.1} parent=11 // pred_check_branch
          %211 = sbr.rel (%p209) target = $region16
        $region15: #{tpu_custom_call.1} parent=11 // pred_region
          _
        $region16: #{tpu_custom_call.1} parent=11 // pred_fallthru
          _
        // Predicated region
        $region17: #{tpu_custom_call.1} parent=11 // pred_check
          %p212 = pneg %p84
        $region18: #{tpu_custom_call.1} parent=11 // pred_check_branch
          %214 = sbr.rel (%p212) target = $region20
        $region19: #{tpu_custom_call.1} parent=11 // pred_region
          _
        $region20: #{tpu_custom_call.1} parent=11 // pred_fallthru
          _
        // Predicated region
        $region21: #{tpu_custom_call.1} parent=11 // pred_check
          %p215 = pneg %p105
        $region22: #{tpu_custom_call.1} parent=11 // pred_check_branch
          %217 = sbr.rel (%p215) target = $region24
        $region23: #{tpu_custom_call.1} parent=11 // pred_region
          _
        $region24: #{tpu_custom_call.1} parent=11 // pred_fallthru
          _
        // Predicated region
        $region25: #{tpu_custom_call.1} parent=11 // pred_check
          %p218 = pneg %p126
        $region26: #{tpu_custom_call.1} parent=11 // pred_check_branch
          %220 = sbr.rel (%p218) target = $region28
        $region27: #{tpu_custom_call.1} parent=11 // pred_region
          _
        $region28: #{tpu_custom_call.1} parent=11 // pred_fallthru
          _
        // Predicated region
        $region29: #{tpu_custom_call.1} parent=11 // pred_check
          %p221 = pneg %p147
        $region30: #{tpu_custom_call.1} parent=11 // pred_check_branch
          %223 = sbr.rel (%p221) target = $region32
        $region31: #{tpu_custom_call.1} parent=11 // pred_region
          _
        $region32: #{tpu_custom_call.1} parent=11 // pred_fallthru
          _
        // Predicated region
        $region33: #{tpu_custom_call.1} parent=11 // pred_check
          %p224 = pneg %p168
        $region34: #{tpu_custom_call.1} parent=11 // pred_check_branch
          %226 = sbr.rel (%p224) target = $region36
        $region35: #{tpu_custom_call.1} parent=11 // pred_region
          _
        $region36: #{tpu_custom_call.1} parent=11 // pred_fallthru
          _
      $region12: #{tpu_custom_call.1} parent=5 // pred_fallthru
        _
      %p227 = scmp.lt.s32.totalorder %s16, 2
      // Predicated region
      $region37: #{tpu_custom_call.1} parent=5 // pred_check
        %p228 = pneg %p227
      $region38: #{tpu_custom_call.1} parent=5 // pred_check_branch
        %230 = sbr.rel (%p228) target = $region40
      $region39: #{tpu_custom_call.1} parent=5 // pred_region
        // Predicated region
        $region41: #{tpu_custom_call.1} parent=39 // pred_check
          %p231 = pneg %p36
        $region42: #{tpu_custom_call.1} parent=39 // pred_check_branch
          %233 = sbr.rel (%p231) target = $region44
        $region43: #{tpu_custom_call.1} parent=39 // pred_region
          %s234 = sand.u32 %s26, 1
          %s235 = sand.u32 %s26, 1
          %s236 = smul.addr %s235, 64
          %s237 = scalar_lea.vmem [#allocation2], %s236
          %s238 = smul.addr %s16, 4
          %s239 = scalar_lea.vmem %s0, %s238
          // Predicated region
          $region45: #{tpu_custom_call.1} parent=43 // pred_check
            _
          $region46: #{tpu_custom_call.1} parent=43 // pred_check_branch
            %241 = sbr.rel (0) target = $region48
          $region47: #{tpu_custom_call.1} parent=43 // pred_region
            // Predicated region
            $region49: #{tpu_custom_call.1} parent=47 // pred_check
              _
            $region50: #{tpu_custom_call.1} parent=47 // pred_check_branch
              %243 = sbr.rel target = $region52
            $region51: #{tpu_custom_call.1} parent=47 // pred_region
              // Predicated region
              $region64: #{tpu_custom_call.1} parent=51 // pred_check
                _
              $region65: #{tpu_custom_call.1} parent=51 // pred_check_branch
                %289 = sbr.rel (0) target = $region67
              $region66: #{tpu_custom_call.1} parent=51 // pred_region
                loop: start=0, step=1, limit=1
                $region68: #{tpu_custom_call.1} parent=66 // loop_pre_header
                  _
                $region69: #{tpu_custom_call.1} parent=66 // loop_header
                  %s291 = sphi 0, %s295
                  %p292 = scmp.ge.s32.totalorder %s291, 1
                  %s296 = sphi %s239, %s239
                  %s297 = sphi %s237, %s237
                $region70: #{tpu_custom_call.1} parent=66 // loop_header_branch
                  %294 = sbr.rel (%p292) target = $region74
                $region71: #{tpu_custom_call.1} parent=66 // loop_body
                  _
                $region72: #{tpu_custom_call.1} parent=66 // loop_footer
                  %s295 = sadd.s32 1, %s291
                $region73: #{tpu_custom_call.1} parent=66 // loop_footer_branch
                  %290 = sbr.rel target = $region69
                $region74: #{tpu_custom_call.1} parent=66 // loop_exit
                  _
                %s299 = ssub.s32 16, 1
                loop: start=0, step=1, limit=1
                $region75: #{tpu_custom_call.1} parent=66 // loop_pre_header
                  _
                $region76: #{tpu_custom_call.1} parent=66 // loop_header
                  %s301 = sphi 0, %s305
                  %p302 = scmp.ge.s32.totalorder %s301, 1
                  %s306 = sphi %s239, %s239
                  %s307 = sphi %s237, %s237
                $region77: #{tpu_custom_call.1} parent=66 // loop_header_branch
                  %304 = sbr.rel (%p302) target = $region81
                $region78: #{tpu_custom_call.1} parent=66 // loop_body
                  %v308 = vld [vmem:[%s306] sm:%s299]
                  %309 = vst [vmem:[%s307] sm:%s299] %v308
                  %v310 = vld [vmem:[%s306 + $0x8] sm:%s299]
                  %311 = vst [vmem:[%s307 + $0x4] sm:%s299] %v310
                  %v312 = vld [vmem:[%s306 + $0x10] sm:%s299]
                  %313 = vst [vmem:[%s307 + $0x8] sm:%s299] %v312
                  %v314 = vld [vmem:[%s306 + $0x18] sm:%s299]
                  %315 = vst [vmem:[%s307 + $0xc] sm:%s299] %v314
                  %v316 = vld [vmem:[%s306 + $0x20] sm:%s299]
                  %317 = vst [vmem:[%s307 + $0x10] sm:%s299] %v316
                  %v318 = vld [vmem:[%s306 + $0x28] sm:%s299]
                  %319 = vst [vmem:[%s307 + $0x14] sm:%s299] %v318
                  %v320 = vld [vmem:[%s306 + $0x30] sm:%s299]
                  %321 = vst [vmem:[%s307 + $0x18] sm:%s299] %v320
                  %v322 = vld [vmem:[%s306 + $0x38] sm:%s299]
                  %323 = vst [vmem:[%s307 + $0x1c] sm:%s299] %v322
                  %v324 = vld [vmem:[%s306 + $0x40] sm:%s299]
                  %325 = vst [vmem:[%s307 + $0x20] sm:%s299] %v324
                  %v326 = vld [vmem:[%s306 + $0x48] sm:%s299]
                  %327 = vst [vmem:[%s307 + $0x24] sm:%s299] %v326
                  %v328 = vld [vmem:[%s306 + $0x50] sm:%s299]
                  %329 = vst [vmem:[%s307 + $0x28] sm:%s299] %v328
                  %v330 = vld [vmem:[%s306 + $0x58] sm:%s299]
                  %331 = vst [vmem:[%s307 + $0x2c] sm:%s299] %v330
                  %v332 = vld [vmem:[%s306 + $0x60] sm:%s299]
                  %333 = vst [vmem:[%s307 + $0x30] sm:%s299] %v332
                  %v334 = vld [vmem:[%s306 + $0x68] sm:%s299]
                  %335 = vst [vmem:[%s307 + $0x34] sm:%s299] %v334
                  %v336 = vld [vmem:[%s306 + $0x70] sm:%s299]
                  %337 = vst [vmem:[%s307 + $0x38] sm:%s299] %v336
                  %v338 = vld [vmem:[%s306 + $0x78] sm:%s299]
                  %339 = vst [vmem:[%s307 + $0x3c] sm:%s299] %v338
                $region79: #{tpu_custom_call.1} parent=66 // loop_footer
                  %s305 = sadd.s32 1, %s301
                $region80: #{tpu_custom_call.1} parent=66 // loop_footer_branch
                  %300 = sbr.rel target = $region76
                $region81: #{tpu_custom_call.1} parent=66 // loop_exit
                  _
              $region67: #{tpu_custom_call.1} parent=51 // pred_fallthru
                _
            $region52: #{tpu_custom_call.1} parent=47 // pred_fallthru
              _
            // Predicated region
            $region53: #{tpu_custom_call.1} parent=47 // pred_check
              _
            $region54: #{tpu_custom_call.1} parent=47 // pred_check_branch
              %245 = sbr.rel (0) target = $region56
            $region55: #{tpu_custom_call.1} parent=47 // pred_region
              %s247 = ssub.s32 16, 1
              loop: start=0, step=1, limit=1
              $region57: #{tpu_custom_call.1} parent=55 // loop_pre_header
                _
              $region58: #{tpu_custom_call.1} parent=55 // loop_header
                %s249 = sphi 0, %s253
                %p250 = scmp.ge.s32.totalorder %s249, 1
                %s254 = sphi %s239, %s239
                %s255 = sphi %s237, %s237
              $region59: #{tpu_custom_call.1} parent=55 // loop_header_branch
                %252 = sbr.rel (%p250) target = $region63
              $region60: #{tpu_custom_call.1} parent=55 // loop_body
                %v256 = vld [vmem:[%s254] sm:%s247]
                %257 = vst [vmem:[%s255] sm:%s247] %v256
                %v258 = vld [vmem:[%s254 + $0x8] sm:%s247]
                %259 = vst [vmem:[%s255 + $0x4] sm:%s247] %v258
                %v260 = vld [vmem:[%s254 + $0x10] sm:%s247]
                %261 = vst [vmem:[%s255 + $0x8] sm:%s247] %v260
                %v262 = vld [vmem:[%s254 + $0x18] sm:%s247]
                %263 = vst [vmem:[%s255 + $0xc] sm:%s247] %v262
                %v264 = vld [vmem:[%s254 + $0x20] sm:%s247]
                %265 = vst [vmem:[%s255 + $0x10] sm:%s247] %v264
                %v266 = vld [vmem:[%s254 + $0x28] sm:%s247]
                %267 = vst [vmem:[%s255 + $0x14] sm:%s247] %v266
                %v268 = vld [vmem:[%s254 + $0x30] sm:%s247]
                %269 = vst [vmem:[%s255 + $0x18] sm:%s247] %v268
                %v270 = vld [vmem:[%s254 + $0x38] sm:%s247]
                %271 = vst [vmem:[%s255 + $0x1c] sm:%s247] %v270
                %v272 = vld [vmem:[%s254 + $0x40] sm:%s247]
                %273 = vst [vmem:[%s255 + $0x20] sm:%s247] %v272
                %v274 = vld [vmem:[%s254 + $0x48] sm:%s247]
                %275 = vst [vmem:[%s255 + $0x24] sm:%s247] %v274
                %v276 = vld [vmem:[%s254 + $0x50] sm:%s247]
                %277 = vst [vmem:[%s255 + $0x28] sm:%s247] %v276
                %v278 = vld [vmem:[%s254 + $0x58] sm:%s247]
                %279 = vst [vmem:[%s255 + $0x2c] sm:%s247] %v278
                %v280 = vld [vmem:[%s254 + $0x60] sm:%s247]
                %281 = vst [vmem:[%s255 + $0x30] sm:%s247] %v280
                %v282 = vld [vmem:[%s254 + $0x68] sm:%s247]
                %283 = vst [vmem:[%s255 + $0x34] sm:%s247] %v282
                %v284 = vld [vmem:[%s254 + $0x70] sm:%s247]
                %285 = vst [vmem:[%s255 + $0x38] sm:%s247] %v284
                %v286 = vld [vmem:[%s254 + $0x78] sm:%s247]
                %287 = vst [vmem:[%s255 + $0x3c] sm:%s247] %v286
              $region61: #{tpu_custom_call.1} parent=55 // loop_footer
                %s253 = sadd.s32 1, %s249
              $region62: #{tpu_custom_call.1} parent=55 // loop_footer_branch
                %248 = sbr.rel target = $region58
              $region63: #{tpu_custom_call.1} parent=55 // loop_exit
                _
            $region56: #{tpu_custom_call.1} parent=47 // pred_fallthru
              _
          $region48: #{tpu_custom_call.1} parent=43 // pred_fallthru
            _
          %340 = vnop
        $region44: #{tpu_custom_call.1} parent=39 // pred_fallthru
          _
      $region40: #{tpu_custom_call.1} parent=5 // pred_fallthru
        _
      %p341 = scmp.le.s32.totalorder 1, %s16
      %p342 = scmp.lt.s32.totalorder %s16, 3
      %p343 = pnand %p341, %p342
      %p344 = pneg %p343
      // Predicated region
      $region82: #{tpu_custom_call.1} parent=5 // pred_check
        _
      $region83: #{tpu_custom_call.1} parent=5 // pred_check_branch
        %346 = sbr.rel (%p343) target = $region85
      $region84: #{tpu_custom_call.1} parent=5 // pred_region
        %s347 = ssub.s32 %s16, 1
        %s348 = sand.u32 %s29, 1
        %s349 = sand.u32 %s29, 1
        %s350 = smul.addr %s349, 64
        %s351 = scalar_lea.vmem [#allocation2], %s350
        // Predicated region
        $region86: #{tpu_custom_call.1} parent=84 // pred_check
          %p352 = pneg %p42
        $region87: #{tpu_custom_call.1} parent=84 // pred_check_branch
          %354 = sbr.rel (%p352) target = $region89
        $region88: #{tpu_custom_call.1} parent=84 // pred_region
          _
        $region89: #{tpu_custom_call.1} parent=84 // pred_fallthru
          _
        %s355 = sand.u32 %s29, 1
        %s356 = sand.u32 %s29, 1
        %s357 = smul.addr %s356, 64
        %s358 = scalar_lea.vmem [#allocation2], %s357
        %p359 = pneg %p42
        %p360 = pneg %p39
        %p361 = pneg %p63
        %p362 = pneg %p60
        %p363 = pneg %p84
        %p364 = pneg %p81
        %p365 = pneg %p105
        %p366 = pneg %p102
        %p367 = pneg %p126
        %p368 = pneg %p123
        %p369 = pneg %p147
        %p370 = pneg %p144
        %p371 = pneg %p168
        %p372 = pneg %p165
        %p373 = pneg %p194
        %p374 = pneg %p191
        %s375 = sand.u32 %s181, 1
        %s376 = scalar_lea.sflag [#allocation4], %s375
        %s377 = sand.u32 %s181, 1
        %s378 = scalar_lea.vmem [#allocation3], %s377
        %v380 = vld [vmem:[%s351] sm:$0xf]
        %v381 = vld [vmem:[%s351 + $0x4] sm:$0xf]
        %v382 = vld [vmem:[%s351 + $0x8] sm:$0xf]
        %v383 = vld [vmem:[%s351 + $0xc] sm:$0xf]
        %v384 = vld [vmem:[%s351 + $0x10] sm:$0xf]
        %v385 = vld [vmem:[%s351 + $0x14] sm:$0xf]
        %v386 = vld [vmem:[%s351 + $0x18] sm:$0xf]
        %v387 = vld [vmem:[%s351 + $0x1c] sm:$0xf]
        %v388 = vld [vmem:[%s351 + $0x20] sm:$0xf]
        %v389 = vld [vmem:[%s351 + $0x24] sm:$0xf]
        %v390 = vld [vmem:[%s351 + $0x28] sm:$0xf]
        %v391 = vld [vmem:[%s351 + $0x2c] sm:$0xf]
        %v392 = vld [vmem:[%s351 + $0x30] sm:$0xf]
        %v393 = vld [vmem:[%s351 + $0x34] sm:$0xf]
        %v394 = vld [vmem:[%s351 + $0x38] sm:$0xf]
        %v395 = vld [vmem:[%s351 + $0x3c] sm:$0xf]
        %v396 = vld [vmem:[%s1] sm:$0xf]
        %v397 = vld [vmem:[%s1 + $0x4] sm:$0xf]
        %v398 = vld [vmem:[%s1 + $0x8] sm:$0xf]
        %v399 = vld [vmem:[%s1 + $0xc] sm:$0xf]
        %v400 = vld [vmem:[%s1 + $0x10] sm:$0xf]
        %v401 = vld [vmem:[%s1 + $0x14] sm:$0xf]
        %v402 = vld [vmem:[%s1 + $0x18] sm:$0xf]
        %v403 = vld [vmem:[%s1 + $0x1c] sm:$0xf]
        %v404 = vld [vmem:[%s1 + $0x20] sm:$0xf]
        %v405 = vld [vmem:[%s1 + $0x24] sm:$0xf]
        %v406 = vld [vmem:[%s1 + $0x28] sm:$0xf]
        %v407 = vld [vmem:[%s1 + $0x2c] sm:$0xf]
        %v408 = vld [vmem:[%s1 + $0x30] sm:$0xf]
        %v409 = vld [vmem:[%s1 + $0x34] sm:$0xf]
        %v410 = vld [vmem:[%s1 + $0x38] sm:$0xf]
        %v411 = vld [vmem:[%s1 + $0x3c] sm:$0xf]
        %v412 = vld [vmem:[%s2] sm:$0xff]
        %v413 = vld [vmem:[%s2 + $0x8] sm:$0xff]
        %v414 = vld [vmem:[%s2 + $0x10] sm:$0xff]
        %v415 = vld [vmem:[%s2 + $0x18] sm:$0xff]
        %v416 = vld [vmem:[%s2 + $0x20] sm:$0xff]
        %v417 = vld [vmem:[%s2 + $0x28] sm:$0xff]
        %v418 = vld [vmem:[%s2 + $0x30] sm:$0xff]
        %v419 = vld [vmem:[%s2 + $0x38] sm:$0xff]
        %v420 = vld [vmem:[%s2 + $0x40] sm:$0xff]
        %v421 = vld [vmem:[%s2 + $0x48] sm:$0xff]
        %v422 = vld [vmem:[%s2 + $0x50] sm:$0xff]
        %v423 = vld [vmem:[%s2 + $0x58] sm:$0xff]
        %v424 = vld [vmem:[%s2 + $0x60] sm:$0xff]
        %v425 = vld [vmem:[%s2 + $0x68] sm:$0xff]
        %v426 = vld [vmem:[%s2 + $0x70] sm:$0xff]
        %v427 = vld [vmem:[%s2 + $0x78] sm:$0xff]
        %429 = vset.pattern.permute.xlu0 0
        %430 = vperm.xlu0 %429, %v412
        %v431 = vpop.permute.xlu0 %430
        %434 = vset.pattern.permute.xlu0 0
        %435 = vperm.xlu0 %434, %v413
        %v436 = vpop.permute.xlu0 %435
        %439 = vset.pattern.permute.xlu0 0
        %440 = vperm.xlu0 %439, %v414
        %v441 = vpop.permute.xlu0 %440
        %444 = vset.pattern.permute.xlu0 0
        %445 = vperm.xlu0 %444, %v415
        %v446 = vpop.permute.xlu0 %445
        %449 = vset.pattern.permute.xlu0 0
        %450 = vperm.xlu0 %449, %v416
        %v451 = vpop.permute.xlu0 %450
        %454 = vset.pattern.permute.xlu0 0
        %455 = vperm.xlu0 %454, %v417
        %v456 = vpop.permute.xlu0 %455
        %459 = vset.pattern.permute.xlu0 0
        %460 = vperm.xlu0 %459, %v418
        %v461 = vpop.permute.xlu0 %460
        %464 = vset.pattern.permute.xlu0 0
        %465 = vperm.xlu0 %464, %v419
        %v466 = vpop.permute.xlu0 %465
        %469 = vset.pattern.permute.xlu0 0
        %470 = vperm.xlu0 %469, %v420
        %v471 = vpop.permute.xlu0 %470
        %474 = vset.pattern.permute.xlu0 0
        %475 = vperm.xlu0 %474, %v421
        %v476 = vpop.permute.xlu0 %475
        %479 = vset.pattern.permute.xlu0 0
        %480 = vperm.xlu0 %479, %v422
        %v481 = vpop.permute.xlu0 %480
        %484 = vset.pattern.permute.xlu0 0
        %485 = vperm.xlu0 %484, %v423
        %v486 = vpop.permute.xlu0 %485
        %489 = vset.pattern.permute.xlu0 0
        %490 = vperm.xlu0 %489, %v424
        %v491 = vpop.permute.xlu0 %490
        %494 = vset.pattern.permute.xlu0 0
        %495 = vperm.xlu0 %494, %v425
        %v496 = vpop.permute.xlu0 %495
        %499 = vset.pattern.permute.xlu0 0
        %500 = vperm.xlu0 %499, %v426
        %v501 = vpop.permute.xlu0 %500
        %504 = vset.pattern.permute.xlu0 0
        %505 = vperm.xlu0 %504, %v427
        %v506 = vpop.permute.xlu0 %505
        %v524 = vunpack.c.l.b16 %v396
        %v525 = vunpack.c.l.b16 %v397
        %v526 = vunpack.c.l.b16 %v398
        %v527 = vunpack.c.l.b16 %v399
        %v528 = vunpack.c.l.b16 %v400
        %v529 = vunpack.c.l.b16 %v401
        %v530 = vunpack.c.l.b16 %v402
        %v531 = vunpack.c.l.b16 %v403
        %v532 = vunpack.c.l.b16 %v404
        %v533 = vunpack.c.l.b16 %v405
        %v534 = vunpack.c.l.b16 %v406
        %v535 = vunpack.c.l.b16 %v407
        %v536 = vunpack.c.l.b16 %v408
        %v537 = vunpack.c.l.b16 %v409
        %v538 = vunpack.c.l.b16 %v410
        %v539 = vunpack.c.l.b16 %v411
        %v540 = vpack.c.b16 %v525, %v524
        %v541 = vpack.c.b16 %v527, %v526
        %v542 = vpack.c.b16 %v529, %v528
        %v543 = vpack.c.b16 %v531, %v530
        %v544 = vpack.c.b16 %v533, %v532
        %v545 = vpack.c.b16 %v535, %v534
        %v546 = vpack.c.b16 %v537, %v536
        %v547 = vpack.c.b16 %v539, %v538
        %v572 = vunpack.c.l.b16 %v380
        %v573 = vunpack.c.l.b16 %v381
        %v574 = vunpack.c.l.b16 %v382
        %v575 = vunpack.c.l.b16 %v383
        %v576 = vunpack.c.l.b16 %v384
        %v577 = vunpack.c.l.b16 %v385
        %v578 = vunpack.c.l.b16 %v386
        %v579 = vunpack.c.l.b16 %v387
        %v580 = vunpack.c.l.b16 %v388
        %v581 = vunpack.c.l.b16 %v389
        %v582 = vunpack.c.l.b16 %v390
        %v583 = vunpack.c.l.b16 %v391
        %v584 = vunpack.c.l.b16 %v392
        %v585 = vunpack.c.l.b16 %v393
        %v586 = vunpack.c.l.b16 %v394
        %v587 = vunpack.c.l.b16 %v395
        %v588 = vpack.c.b16 %v573, %v572
        %v589 = vpack.c.b16 %v575, %v574
        %v590 = vpack.c.b16 %v577, %v576
        %v591 = vpack.c.b16 %v579, %v578
        %v592 = vpack.c.b16 %v581, %v580
        %v593 = vpack.c.b16 %v583, %v582
        %v594 = vpack.c.b16 %v585, %v584
        %v595 = vpack.c.b16 %v587, %v586
        %604 = vmatprep.subr.bf16.mxu0 0
        %605 = vmatpush1.bf16.msra.mxu0 %v595
        %606 = vmatprep.subr.bf16.mxu0 0
        %607 = vmatpush1.bf16.msra.mxu0 %v594
        %608 = vmatprep.subr.bf16.mxu0 0
        %609 = vmatpush1.bf16.msra.mxu0 %v593
        %610 = vmatprep.subr.bf16.mxu0 0
        %611 = vmatpush1.bf16.msra.mxu0 %v592
        %612 = vmatprep.subr.bf16.mxu0 0
        %613 = vmatpush1.bf16.msra.mxu0 %v591
        %614 = vmatprep.subr.bf16.mxu0 0
        %615 = vmatpush1.bf16.msra.mxu0 %v590
        %616 = vmatprep.subr.bf16.mxu0 0
        %617 = vmatpush1.bf16.msra.mxu0 %v589
        %618 = vmatprep.subr.bf16.mxu0 0
        %619 = vmatpush1.bf16.msra.mxu0 %v588
        %620 = vmatprep.subr.bf16.mxu0 0
        %621 = vmatpush2.bf16.msra.mxu0 0
        %622 = vmatprep.subr.bf16.mxu0 0
        %623 = vmatpush2.bf16.msra.mxu0 0
        %624 = vmatprep.subr.bf16.mxu0 0
        %625 = vmatpush2.bf16.msra.mxu0 0
        %626 = vmatprep.subr.bf16.mxu0 0
        %627 = vmatpush2.bf16.msra.mxu0 0
        %628 = vmatprep.subr.bf16.mxu0 0
        %629 = vmatpush2.bf16.msra.mxu0 0
        %630 = vmatprep.subr.bf16.mxu0 0
        %631 = vmatpush2.bf16.msra.mxu0 0
        %632 = vmatprep.subr.bf16.mxu0 0
        %633 = vmatpush2.bf16.msra.mxu0 0
        %634 = vmatprep.subr.bf16.mxu0 0
        %635 = vmatpush2.bf16.msra.mxu0 0
        %636 = vmatprep.mubr.bf16.mxu0 0
        %637 = vmatmul.mubr.bf16.gmra.mxu0 %v540
        %v638 = vpop.f32.mrf.mxu0
        %v639 = vadd.f32 %v431, %v638
        %v640 = vpop.f32.mrf.mxu0
        %v641 = vpop.f32.mrf.mxu0
        %v642 = vadd.f32 %v436, %v641
        %v643 = vpop.f32.mrf.mxu0
        %644 = vmatprep.mubr.bf16.mxu0 0
        %645 = vmatmul.mubr.bf16.gmra.mxu0 %v541
        %v646 = vpop.f32.mrf.mxu0
        %v647 = vadd.f32 %v441, %v646
        %v648 = vpop.f32.mrf.mxu0
        %v649 = vpop.f32.mrf.mxu0
        %v650 = vadd.f32 %v446, %v649
        %v651 = vpop.f32.mrf.mxu0
        %652 = vmatprep.mubr.bf16.mxu0 0
        %653 = vmatmul.mubr.bf16.gmra.mxu0 %v542
        %v654 = vpop.f32.mrf.mxu0
        %v655 = vadd.f32 %v451, %v654
        %v656 = vpop.f32.mrf.mxu0
        %v657 = vpop.f32.mrf.mxu0
        %v658 = vadd.f32 %v456, %v657
        %v659 = vpop.f32.mrf.mxu0
        %660 = vmatprep.mubr.bf16.mxu0 0
        %661 = vmatmul.mubr.bf16.gmra.mxu0 %v543
        %v662 = vpop.f32.mrf.mxu0
        %v663 = vadd.f32 %v461, %v662
        %v664 = vpop.f32.mrf.mxu0
        %v665 = vpop.f32.mrf.mxu0
        %v666 = vadd.f32 %v466, %v665
        %v667 = vpop.f32.mrf.mxu0
        %668 = vmatprep.mubr.bf16.mxu0 0
        %669 = vmatmul.mubr.bf16.gmra.mxu0 %v544
        %v670 = vpop.f32.mrf.mxu0
        %v671 = vadd.f32 %v471, %v670
        %v672 = vpop.f32.mrf.mxu0
        %v673 = vpop.f32.mrf.mxu0
        %v674 = vadd.f32 %v476, %v673
        %v675 = vpop.f32.mrf.mxu0
        %676 = vmatprep.mubr.bf16.mxu0 0
        %677 = vmatmul.mubr.bf16.gmra.mxu0 %v545
        %v678 = vpop.f32.mrf.mxu0
        %v679 = vadd.f32 %v481, %v678
        %v680 = vpop.f32.mrf.mxu0
        %v681 = vpop.f32.mrf.mxu0
        %v682 = vadd.f32 %v486, %v681
        %v683 = vpop.f32.mrf.mxu0
        %684 = vmatprep.mubr.bf16.mxu0 0
        %685 = vmatmul.mubr.bf16.gmra.mxu0 %v546
        %v686 = vpop.f32.mrf.mxu0
        %v687 = vadd.f32 %v491, %v686
        %v688 = vpop.f32.mrf.mxu0
        %v689 = vpop.f32.mrf.mxu0
        %v690 = vadd.f32 %v496, %v689
        %v691 = vpop.f32.mrf.mxu0
        %692 = vmatprep.mubr.bf16.mxu0 0
        %693 = vmatmul.mubr.bf16.gmra.mxu0 %v547
        %v694 = vpop.f32.mrf.mxu0
        %v695 = vadd.f32 %v501, %v694
        %v696 = vpop.f32.mrf.mxu0
        %v697 = vpop.f32.mrf.mxu0
        %v698 = vadd.f32 %v506, %v697
        %v699 = vpop.f32.mrf.mxu0
        %700 = vdwg.mxu0
        %v701 = vmax.f32 %v639, 0.0
        %v702 = vmax.f32 %v642, 0.0
        %v703 = vmax.f32 %v647, 0.0
        %v704 = vmax.f32 %v650, 0.0
        %v705 = vmax.f32 %v655, 0.0
        %v706 = vmax.f32 %v658, 0.0
        %v707 = vmax.f32 %v663, 0.0
        %v708 = vmax.f32 %v666, 0.0
        %v709 = vmax.f32 %v671, 0.0
        %v710 = vmax.f32 %v674, 0.0
        %v711 = vmax.f32 %v679, 0.0
        %v712 = vmax.f32 %v682, 0.0
        %v713 = vmax.f32 %v687, 0.0
        %v714 = vmax.f32 %v690, 0.0
        %v715 = vmax.f32 %v695, 0.0
        %v716 = vmax.f32 %v698, 0.0
        %v717 = vpack.c.bf16 %v702, %v701
        %v718 = vpack.c.bf16 %v704, %v703
        %v719 = vpack.c.bf16 %v706, %v705
        %v720 = vpack.c.bf16 %v708, %v707
        %v721 = vpack.c.bf16 %v710, %v709
        %v722 = vpack.c.bf16 %v712, %v711
        %v723 = vpack.c.bf16 %v714, %v713
        %v724 = vpack.c.bf16 %v716, %v715
        %v725 = vld [vmem:[%s3] sm:$0xf]
        %v726 = vld [vmem:[%s3 + $0x4] sm:$0xf]
        %v727 = vld [vmem:[%s3 + $0x8] sm:$0xf]
        %v728 = vld [vmem:[%s3 + $0xc] sm:$0xf]
        %v729 = vld [vmem:[%s3 + $0x10] sm:$0xf]
        %v730 = vld [vmem:[%s3 + $0x14] sm:$0xf]
        %v731 = vld [vmem:[%s3 + $0x18] sm:$0xf]
        %v732 = vld [vmem:[%s3 + $0x1c] sm:$0xf]
        %v733 = vld [vmem:[%s3 + $0x20] sm:$0xf]
        %v734 = vld [vmem:[%s3 + $0x24] sm:$0xf]
        %v735 = vld [vmem:[%s3 + $0x28] sm:$0xf]
        %v736 = vld [vmem:[%s3 + $0x2c] sm:$0xf]
        %v737 = vld [vmem:[%s3 + $0x30] sm:$0xf]
        %v738 = vld [vmem:[%s3 + $0x34] sm:$0xf]
        %v739 = vld [vmem:[%s3 + $0x38] sm:$0xf]
        %v740 = vld [vmem:[%s3 + $0x3c] sm:$0xf]
        %v741 = vld [vmem:[%s4] sm:$0xff]
        %v742 = vld [vmem:[%s4 + $0x8] sm:$0xff]
        %v743 = vld [vmem:[%s4 + $0x10] sm:$0xff]
        %v744 = vld [vmem:[%s4 + $0x18] sm:$0xff]
        %v745 = vld [vmem:[%s4 + $0x20] sm:$0xff]
        %v746 = vld [vmem:[%s4 + $0x28] sm:$0xff]
        %v747 = vld [vmem:[%s4 + $0x30] sm:$0xff]
        %v748 = vld [vmem:[%s4 + $0x38] sm:$0xff]
        %v749 = vld [vmem:[%s4 + $0x40] sm:$0xff]
        %v750 = vld [vmem:[%s4 + $0x48] sm:$0xff]
        %v751 = vld [vmem:[%s4 + $0x50] sm:$0xff]
        %v752 = vld [vmem:[%s4 + $0x58] sm:$0xff]
        %v753 = vld [vmem:[%s4 + $0x60] sm:$0xff]
        %v754 = vld [vmem:[%s4 + $0x68] sm:$0xff]
        %v755 = vld [vmem:[%s4 + $0x70] sm:$0xff]
        %v756 = vld [vmem:[%s4 + $0x78] sm:$0xff]
        %758 = vset.pattern.permute.xlu0 0
        %759 = vperm.xlu0 %758, %v741
        %v760 = vpop.permute.xlu0 %759
        %763 = vset.pattern.permute.xlu0 0
        %764 = vperm.xlu0 %763, %v742
        %v765 = vpop.permute.xlu0 %764
        %768 = vset.pattern.permute.xlu0 0
        %769 = vperm.xlu0 %768, %v743
        %v770 = vpop.permute.xlu0 %769
        %773 = vset.pattern.permute.xlu0 0
        %774 = vperm.xlu0 %773, %v744
        %v775 = vpop.permute.xlu0 %774
        %778 = vset.pattern.permute.xlu0 0
        %779 = vperm.xlu0 %778, %v745
        %v780 = vpop.permute.xlu0 %779
        %783 = vset.pattern.permute.xlu0 0
        %784 = vperm.xlu0 %783, %v746
        %v785 = vpop.permute.xlu0 %784
        %788 = vset.pattern.permute.xlu0 0
        %789 = vperm.xlu0 %788, %v747
        %v790 = vpop.permute.xlu0 %789
        %793 = vset.pattern.permute.xlu0 0
        %794 = vperm.xlu0 %793, %v748
        %v795 = vpop.permute.xlu0 %794
        %798 = vset.pattern.permute.xlu0 0
        %799 = vperm.xlu0 %798, %v749
        %v800 = vpop.permute.xlu0 %799
        %803 = vset.pattern.permute.xlu0 0
        %804 = vperm.xlu0 %803, %v750
        %v805 = vpop.permute.xlu0 %804
        %808 = vset.pattern.permute.xlu0 0
        %809 = vperm.xlu0 %808, %v751
        %v810 = vpop.permute.xlu0 %809
        %813 = vset.pattern.permute.xlu0 0
        %814 = vperm.xlu0 %813, %v752
        %v815 = vpop.permute.xlu0 %814
        %818 = vset.pattern.permute.xlu0 0
        %819 = vperm.xlu0 %818, %v753
        %v820 = vpop.permute.xlu0 %819
        %823 = vset.pattern.permute.xlu0 0
        %824 = vperm.xlu0 %823, %v754
        %v825 = vpop.permute.xlu0 %824
        %828 = vset.pattern.permute.xlu0 0
        %829 = vperm.xlu0 %828, %v755
        %v830 = vpop.permute.xlu0 %829
        %833 = vset.pattern.permute.xlu0 0
        %834 = vperm.xlu0 %833, %v756
        %v835 = vpop.permute.xlu0 %834
        %v853 = vunpack.c.l.b16 %v725
        %v854 = vunpack.c.l.b16 %v726
        %v855 = vunpack.c.l.b16 %v727
        %v856 = vunpack.c.l.b16 %v728
        %v857 = vunpack.c.l.b16 %v729
        %v858 = vunpack.c.l.b16 %v730
        %v859 = vunpack.c.l.b16 %v731
        %v860 = vunpack.c.l.b16 %v732
        %v861 = vunpack.c.l.b16 %v733
        %v862 = vunpack.c.l.b16 %v734
        %v863 = vunpack.c.l.b16 %v735
        %v864 = vunpack.c.l.b16 %v736
        %v865 = vunpack.c.l.b16 %v737
        %v866 = vunpack.c.l.b16 %v738
        %v867 = vunpack.c.l.b16 %v739
        %v868 = vunpack.c.l.b16 %v740
        %v869 = vpack.c.b16 %v854, %v853
        %v870 = vpack.c.b16 %v856, %v855
        %v871 = vpack.c.b16 %v858, %v857
        %v872 = vpack.c.b16 %v860, %v859
        %v873 = vpack.c.b16 %v862, %v861
        %v874 = vpack.c.b16 %v864, %v863
        %v875 = vpack.c.b16 %v866, %v865
        %v876 = vpack.c.b16 %v868, %v867
        %885 = vmatprep.subr.bf16.mxu0 0
        %886 = vmatpush1.bf16.msra.mxu0 %v724
        %887 = vmatprep.subr.bf16.mxu0 0
        %888 = vmatpush1.bf16.msra.mxu0 %v723
        %889 = vmatprep.subr.bf16.mxu0 0
        %890 = vmatpush1.bf16.msra.mxu0 %v722
        %891 = vmatprep.subr.bf16.mxu0 0
        %892 = vmatpush1.bf16.msra.mxu0 %v721
        %893 = vmatprep.subr.bf16.mxu0 0
        %894 = vmatpush1.bf16.msra.mxu0 %v720
        %895 = vmatprep.subr.bf16.mxu0 0
        %896 = vmatpush1.bf16.msra.mxu0 %v719
        %897 = vmatprep.subr.bf16.mxu0 0
        %898 = vmatpush1.bf16.msra.mxu0 %v718
        %899 = vmatprep.subr.bf16.mxu0 0
        %900 = vmatpush1.bf16.msra.mxu0 %v717
        %901 = vmatprep.subr.bf16.mxu0 0
        %902 = vmatpush2.bf16.msra.mxu0 0
        %903 = vmatprep.subr.bf16.mxu0 0
        %904 = vmatpush2.bf16.msra.mxu0 0
        %905 = vmatprep.subr.bf16.mxu0 0
        %906 = vmatpush2.bf16.msra.mxu0 0
        %907 = vmatprep.subr.bf16.mxu0 0
        %908 = vmatpush2.bf16.msra.mxu0 0
        %909 = vmatprep.subr.bf16.mxu0 0
        %910 = vmatpush2.bf16.msra.mxu0 0
        %911 = vmatprep.subr.bf16.mxu0 0
        %912 = vmatpush2.bf16.msra.mxu0 0
        %913 = vmatprep.subr.bf16.mxu0 0
        %914 = vmatpush2.bf16.msra.mxu0 0
        %915 = vmatprep.subr.bf16.mxu0 0
        %916 = vmatpush2.bf16.msra.mxu0 0
        %917 = vmatprep.mubr.bf16.mxu0 0
        %918 = vmatmul.mubr.bf16.gmra.mxu0 %v869
        %v919 = vpop.f32.mrf.mxu0
        %v920 = vadd.f32 %v760, %v919
        %v921 = vpop.f32.mrf.mxu0
        %v922 = vpop.f32.mrf.mxu0
        %v923 = vadd.f32 %v765, %v922
        %v924 = vpop.f32.mrf.mxu0
        %925 = vmatprep.mubr.bf16.mxu0 0
        %926 = vmatmul.mubr.bf16.gmra.mxu0 %v870
        %v927 = vpop.f32.mrf.mxu0
        %v928 = vadd.f32 %v770, %v927
        %v929 = vpop.f32.mrf.mxu0
        %v930 = vpop.f32.mrf.mxu0
        %v931 = vadd.f32 %v775, %v930
        %v932 = vpop.f32.mrf.mxu0
        %933 = vmatprep.mubr.bf16.mxu0 0
        %934 = vmatmul.mubr.bf16.gmra.mxu0 %v871
        %v935 = vpop.f32.mrf.mxu0
        %v936 = vadd.f32 %v780, %v935
        %v937 = vpop.f32.mrf.mxu0
        %v938 = vpop.f32.mrf.mxu0
        %v939 = vadd.f32 %v785, %v938
        %v940 = vpop.f32.mrf.mxu0
        %941 = vmatprep.mubr.bf16.mxu0 0
        %942 = vmatmul.mubr.bf16.gmra.mxu0 %v872
        %v943 = vpop.f32.mrf.mxu0
        %v944 = vadd.f32 %v790, %v943
        %v945 = vpop.f32.mrf.mxu0
        %v946 = vpop.f32.mrf.mxu0
        %v947 = vadd.f32 %v795, %v946
        %v948 = vpop.f32.mrf.mxu0
        %949 = vmatprep.mubr.bf16.mxu0 0
        %950 = vmatmul.mubr.bf16.gmra.mxu0 %v873
        %v951 = vpop.f32.mrf.mxu0
        %v952 = vadd.f32 %v800, %v951
        %v953 = vpop.f32.mrf.mxu0
        %v954 = vpop.f32.mrf.mxu0
        %v955 = vadd.f32 %v805, %v954
        %v956 = vpop.f32.mrf.mxu0
        %957 = vmatprep.mubr.bf16.mxu0 0
        %958 = vmatmul.mubr.bf16.gmra.mxu0 %v874
        %v959 = vpop.f32.mrf.mxu0
        %v960 = vadd.f32 %v810, %v959
        %v961 = vpop.f32.mrf.mxu0
        %v962 = vpop.f32.mrf.mxu0
        %v963 = vadd.f32 %v815, %v962
        %v964 = vpop.f32.mrf.mxu0
        %965 = vmatprep.mubr.bf16.mxu0 0
        %966 = vmatmul.mubr.bf16.gmra.mxu0 %v875
        %v967 = vpop.f32.mrf.mxu0
        %v968 = vadd.f32 %v820, %v967
        %v969 = vpop.f32.mrf.mxu0
        %v970 = vpop.f32.mrf.mxu0
        %v971 = vadd.f32 %v825, %v970
        %v972 = vpop.f32.mrf.mxu0
        %973 = vmatprep.mubr.bf16.mxu0 0
        %974 = vmatmul.mubr.bf16.gmra.mxu0 %v876
        %v975 = vpop.f32.mrf.mxu0
        %v976 = vadd.f32 %v830, %v975
        %v977 = vpop.f32.mrf.mxu0
        %v978 = vpop.f32.mrf.mxu0
        %v979 = vadd.f32 %v835, %v978
        %v980 = vpop.f32.mrf.mxu0
        %981 = vdwg.mxu0
        %v982 = vmax.f32 %v920, 0.0
        %v983 = vmax.f32 %v923, 0.0
        %v984 = vmax.f32 %v928, 0.0
        %v985 = vmax.f32 %v931, 0.0
        %v986 = vmax.f32 %v936, 0.0
        %v987 = vmax.f32 %v939, 0.0
        %v988 = vmax.f32 %v944, 0.0
        %v989 = vmax.f32 %v947, 0.0
        %v990 = vmax.f32 %v952, 0.0
        %v991 = vmax.f32 %v955, 0.0
        %v992 = vmax.f32 %v960, 0.0
        %v993 = vmax.f32 %v963, 0.0
        %v994 = vmax.f32 %v968, 0.0
        %v995 = vmax.f32 %v971, 0.0
        %v996 = vmax.f32 %v976, 0.0
        %v997 = vmax.f32 %v979, 0.0
        %v998 = vpack.c.bf16 %v983, %v982
        %v999 = vpack.c.bf16 %v985, %v984
        %v1000 = vpack.c.bf16 %v987, %v986
        %v1001 = vpack.c.bf16 %v989, %v988
        %v1002 = vpack.c.bf16 %v991, %v990
        %v1003 = vpack.c.bf16 %v993, %v992
        %v1004 = vpack.c.bf16 %v995, %v994
        %v1005 = vpack.c.bf16 %v997, %v996
        %v1006 = vld [vmem:[%s5] sm:$0xf]
        %v1007 = vld [vmem:[%s5 + $0x4] sm:$0xf]
        %v1008 = vld [vmem:[%s6] sm:$0xff]
        %v1009 = vld [vmem:[%s6 + $0x8] sm:$0xff]
        %1011 = vset.pattern.permute.xlu0 0
        %1012 = vperm.xlu0 %1011, %v1008
        %v1013 = vpop.permute.xlu0 %1012
        %1016 = vset.pattern.permute.xlu0 0
        %1017 = vperm.xlu0 %1016, %v1009
        %v1018 = vpop.permute.xlu0 %1017
        %v1021 = vunpack.c.l.b16 %v1006
        %v1022 = vunpack.c.l.b16 %v1007
        %v1023 = vpack.c.b16 %v1022, %v1021
        %1025 = vmatprep.subr.bf16.mxu0 0
        %1026 = vmatpush1.bf16.msra.mxu0 %v1005
        %1027 = vmatprep.subr.bf16.mxu0 0
        %1028 = vmatpush1.bf16.msra.mxu0 %v1004
        %1029 = vmatprep.subr.bf16.mxu0 0
        %1030 = vmatpush1.bf16.msra.mxu0 %v1003
        %1031 = vmatprep.subr.bf16.mxu0 0
        %1032 = vmatpush1.bf16.msra.mxu0 %v1002
        %1033 = vmatprep.subr.bf16.mxu0 0
        %1034 = vmatpush1.bf16.msra.mxu0 %v1001
        %1035 = vmatprep.subr.bf16.mxu0 0
        %1036 = vmatpush1.bf16.msra.mxu0 %v1000
        %1037 = vmatprep.subr.bf16.mxu0 0
        %1038 = vmatpush1.bf16.msra.mxu0 %v999
        %1039 = vmatprep.subr.bf16.mxu0 0
        %1040 = vmatpush1.bf16.msra.mxu0 %v998
        %1041 = vmatprep.subr.bf16.mxu0 0
        %1042 = vmatpush2.bf16.msra.mxu0 0
        %1043 = vmatprep.subr.bf16.mxu0 0
        %1044 = vmatpush2.bf16.msra.mxu0 0
        %1045 = vmatprep.subr.bf16.mxu0 0
        %1046 = vmatpush2.bf16.msra.mxu0 0
        %1047 = vmatprep.subr.bf16.mxu0 0
        %1048 = vmatpush2.bf16.msra.mxu0 0
        %1049 = vmatprep.subr.bf16.mxu0 0
        %1050 = vmatpush2.bf16.msra.mxu0 0
        %1051 = vmatprep.subr.bf16.mxu0 0
        %1052 = vmatpush2.bf16.msra.mxu0 0
        %1053 = vmatprep.subr.bf16.mxu0 0
        %1054 = vmatpush2.bf16.msra.mxu0 0
        %1055 = vmatprep.subr.bf16.mxu0 0
        %1056 = vmatpush2.bf16.msra.mxu0 0
        %1057 = vmatprep.mubr.bf16.mxu0 0
        %1058 = vmatmul.mubr.bf16.gmra.mxu0 %v1023
        %v1059 = vpop.f32.mrf.mxu0
        %v1060 = vadd.f32 %v1013, %v1059
        %v1061 = vpop.f32.mrf.mxu0
        %v1062 = vpop.f32.mrf.mxu0
        %v1063 = vpop.f32.mrf.mxu0
        %1064 = vdwg.mxu0
        %1065 = vst [vmem:[%s378] sm:$0x1] %v1060
        %s1066 = sand.u32 %s181, 1
        %s1067 = scalar_lea.sflag [#allocation4], %s1066
        %s1068 = sand.u32 %s181, 1
        %s1069 = scalar_lea.vmem [#allocation3], %s1068
        // Predicated region
        $region90: #{tpu_custom_call.1} parent=84 // pred_check
          %p1070 = pneg %p191
        $region91: #{tpu_custom_call.1} parent=84 // pred_check_branch
          %1072 = sbr.rel (%p1070) target = $region93
        $region92: #{tpu_custom_call.1} parent=84 // pred_region
          %s1074 = ssub.s32 16, 16
          %1075 = vsyncadd %s1067, %s1074
          %s1076 = smul.addr %s21, 16
          %s1077 = scalar_lea.hbm %s7, %s1076
          %s1079 = sshll.u32 %s1069, 4
          %s1080 = int_to_ptr.vmem [resolvable:$true] %s1079
          %1082 = dma.vmem_to_hbm [thread:$0]  %s1080, 16, %s1077, %s1067
        $region93: #{tpu_custom_call.1} parent=84 // pred_fallthru
          _
      $region85: #{tpu_custom_call.1} parent=5 // pred_fallthru
        _
      %p1083 = scmp.le.s32.totalorder 2, %s16
      // Predicated region
      $region94: #{tpu_custom_call.1} parent=5 // pred_check
        %p1084 = pneg %p1083
      $region95: #{tpu_custom_call.1} parent=5 // pred_check_branch
        %1086 = sbr.rel (%p1084) target = $region97
      $region96: #{tpu_custom_call.1} parent=5 // pred_region
        %s1087 = ssub.s32 %s16, 2
        // Predicated region
        $region98: #{tpu_custom_call.1} parent=96 // pred_check
          %p1088 = pneg %p197
        $region99: #{tpu_custom_call.1} parent=96 // pred_check_branch
          %1090 = sbr.rel (%p1088) target = $region101
        $region100: #{tpu_custom_call.1} parent=96 // pred_region
          %s1091 = sand.u32 %s182, 1
          %s1092 = scalar_lea.sflag [#allocation4], %s1091
          %s1093 = sand.u32 %s182, 1
          %s1094 = scalar_lea.vmem [#allocation3], %s1093
          %1095 = dma.done %s1092, 16
        $region101: #{tpu_custom_call.1} parent=96 // pred_fallthru
          _
      $region97: #{tpu_custom_call.1} parent=5 // pred_fallthru
        _
    $region6: #{tpu_custom_call.1} parent=1 // loop_footer
      %s20 = sadd.s32 1, %s16
    $region7: #{tpu_custom_call.1} parent=1 // loop_footer_branch
      %15 = sbr.rel target = $region3
    $region8: #{tpu_custom_call.1} parent=1 // loop_exit
      _
    %1096 = vsyncpa [#allocation4], 1
    %s1097 = scalar_lea.sflag [#allocation4], 1
    %1098 = vsyncpa %s1097, 1

</llo_original>
